<compile_context>
chip_gen: v7x
topology: tpu7x:2x2x1
jax: 0.10.0
libtpu: 0.0.40
codegen_flags: <defaults>
</compile_context>

<pallas_src>
from functools import partial

import jax
import jax.numpy as jnp
from jax.experimental import pallas as pl
from jax.experimental.pallas import tpu as pltpu

D_MODEL = 64
AGE_DIM = 12            # 2 * (64 // 10)
GENDER_DIM = 12         # 2 * 6
SIGNUP_DIM = 6          # 1 * 6
PREF_DIM = 34           # 5 * 6 + (64 % 10)
HIDDEN = 2 * D_MODEL    # 128
LANES = 2 * D_MODEL     # 128 : two batch rows per lane-dense row
SLAB_W = 2 * HIDDEN     # 256 : slab width (b1' needs 256 lanes)
EPS = 1.1920928955078125e-07   # torch.finfo(torch.float32).eps (RMSNorm default)

# lane offsets of each feature segment inside one 64-lane feature vector
AGE_OFF = 0
GENDER_OFF = AGE_OFF + AGE_DIM       # 12
SD_OFF = GENDER_OFF + GENDER_DIM     # 24
PREF_OFF = SD_OFF + SIGNUP_DIM       # 30

# parameter-slab row layout (fp32, shape (SLAB_ROWS, 256))
ROW_W_LIN, ROW_B_LIN = 0, 1
ROW_MAGE_L, ROW_MAGE_R, ROW_MSD_L, ROW_MSD_R, ROW_MOTHER = 2, 3, 4, 5, 6
ROW_MLEFT, ROW_MRIGHT = 7, 8
ROW_Q1_L, ROW_Q1_R, ROW_Q2_L, ROW_Q2_R = 9, 10, 11, 12
ROW_GN, ROW_G01, ROW_B2, ROW_B1 = 13, 14, 15, 16
SLAB_ROWS = 24   # 17 used, padded to a sublane multiple of 8


def _round_up(n: int, m: int) -> int:
    return ((n + m - 1) // m) * m


def _rmsnorm(x, gamma):
    ms = jnp.mean(x * x, axis=-1, keepdims=True)
    return x * jax.lax.rsqrt(ms + EPS) * gamma


# --------------------------------------------------------------------------
# Kernel: one lane-dense row = two independent batch rows (left / right half)
# --------------------------------------------------------------------------
def user_tower_kernel(x_ref, slab_ref, w1_ref, w2_ref, o_ref):
    # x_ref: (TB2, 128) packed features (two batch rows per row)
    # slab_ref: (24, 256) resident params; w1_ref: (128, 256) bf16 block-diag;
    # w2_ref: (256, 128) bf16 block-diag; o_ref: (TB2, 128) fp32.
    x_in = x_ref[...]

    def row(r, width=LANES):                       # (1, width) param row
        return slab_ref[r:r + 1, 0:width]

    # Linear(1, dim) encoders for age / signup_date; embedding lanes pass
    # through (W_LIN = 1, B_LIN = 0 there).
    lin = x_in * row(ROW_W_LIN) + row(ROW_B_LIN)   # (TB2, 128)
    lin2 = lin * lin

    def seg_inv(mask_row, inv_dim):
        ms = jnp.sum(lin2 * mask_row, axis=-1, keepdims=True) * inv_dim
        return jax.lax.rsqrt(ms + EPS)             # (TB2, 1)

    inv_al = seg_inv(row(ROW_MAGE_L), 1.0 / AGE_DIM)
    inv_ar = seg_inv(row(ROW_MAGE_R), 1.0 / AGE_DIM)
    inv_sl = seg_inv(row(ROW_MSD_L), 1.0 / SIGNUP_DIM)
    inv_sr = seg_inv(row(ROW_MSD_R), 1.0 / SIGNUP_DIM)
    seg_scale = (row(ROW_MOTHER)
                 + row(ROW_MAGE_L) * inv_al + row(ROW_MAGE_R) * inv_ar
                 + row(ROW_MSD_L) * inv_sl + row(ROW_MSD_R) * inv_sr)
    # xc == cat([age_norm, gender, sd_norm, pref]) with the segment / norm
    # gammas folded into the Q / GN / G01 rows below.
    xc = lin * seg_scale
    xc2 = xc * xc

    # Fused self.norm followed by self.norm1, computed per 64-lane half.
    # Q rows are pre-scaled by 1/64 so the sums are means directly.
    ms1_l = jnp.sum(xc2 * row(ROW_Q1_L), axis=-1, keepdims=True)
    ms1_r = jnp.sum(xc2 * row(ROW_Q1_R), axis=-1, keepdims=True)
    ms2_l = jnp.sum(xc2 * row(ROW_Q2_L), axis=-1, keepdims=True)
    ms2_r = jnp.sum(xc2 * row(ROW_Q2_R), axis=-1, keepdims=True)
    d1_l = ms1_l + EPS
    d1_r = ms1_r + EPS
    inv1_l = jax.lax.rsqrt(d1_l)
    inv1_r = jax.lax.rsqrt(d1_r)
    inv2_l = jax.lax.rsqrt(ms2_l / d1_l + EPS)
    inv2_r = jax.lax.rsqrt(ms2_r / d1_r + EPS)
    a1 = inv1_l * row(ROW_MLEFT) + inv1_r * row(ROW_MRIGHT)
    a12 = (inv1_l * inv2_l) * row(ROW_MLEFT) + (inv1_r * inv2_r) * row(ROW_MRIGHT)
    x = xc * row(ROW_GN) * a1          # self.norm(xc)          (residual)
    x1 = xc * row(ROW_G01) * a12       # self.norm1(self.norm(xc))

    # MLP on block-diagonal weights: bf16 into the MXU, fp32 accumulation.
    b1 = slab_ref[ROW_B1:ROW_B1 + 1, :]                       # (1, 256)
    y = jnp.dot(x1.astype(jnp.bfloat16), w1_ref[...],
                preferred_element_type=jnp.float32) + b1
    y = jnp.maximum(y, 0.0)                                   # relu(fn1(.))
    z = jnp.dot(y.astype(jnp.bfloat16), w2_ref[...],
                preferred_element_type=jnp.float32) + row(ROW_B2)
    z = jnp.maximum(z, 0.0)                                   # relu(fn2(.))

    o_ref[...] = z + x                                        # residual


# --------------------------------------------------------------------------
# Parameters
# --------------------------------------------------------------------------
def init_params(key):
    ks = jax.random.split(key, 10)

    def lin(kw, kb, fan_in, fan_out):
        bound = 1.0 / jnp.sqrt(fan_in)
        w = jax.random.uniform(kw, (fan_in, fan_out), jnp.float32, -bound, bound)
        b = jax.random.uniform(kb, (1, fan_out), jnp.float32, -bound, bound)
        return w, b

    p = {}
    p["gender_table"] = jax.random.normal(ks[0], (3, GENDER_DIM), jnp.float32)
    p["pref_table"] = jax.random.normal(ks[1], (5, PREF_DIM), jnp.float32)
    p["w_age"], p["b_age"] = lin(ks[2], ks[3], 1, AGE_DIM)
    p["w_sd"], p["b_sd"] = lin(ks[4], ks[5], 1, SIGNUP_DIM)
    p["g_age"] = jnp.ones((1, AGE_DIM), jnp.float32)
    p["g_sd"] = jnp.ones((1, SIGNUP_DIM), jnp.float32)
    p["g_norm"] = jnp.ones((1, D_MODEL), jnp.float32)
    p["g_norm1"] = jnp.ones((1, D_MODEL), jnp.float32)
    p["w1"], p["b1"] = lin(ks[6], ks[7], D_MODEL, HIDDEN)
    p["w2"], p["b2"] = lin(ks[8], ks[9], HIDDEN, D_MODEL)
    # fn3 / fn4 / norm2 exist in __init__ but are unused in forward.
    return p


def pack_params(p):
    """Pack small parameter vectors into one (8,128)-aligned fp32 slab, build
    the block-diagonal bf16 weights (two batch rows per lane-dense row)."""
    f32 = jnp.float32
    ones64 = jnp.ones((D_MODEL,), f32)
    zeros64 = jnp.zeros((D_MODEL,), f32)

    def seg64(age_vals, sd_vals, fill):
        r = jnp.full((D_MODEL,), fill, f32)
        r = r.at[AGE_OFF:AGE_OFF + AGE_DIM].set(age_vals)
        r = r.at[SD_OFF:SD_OFF + SIGNUP_DIM].set(sd_vals)
        return r

    both = lambda v: jnp.concatenate([v, v])          # same values, both halves
    left = lambda v: jnp.concatenate([v, zeros64])    # left half only
    right = lambda v: jnp.concatenate([zeros64, v])   # right half only

    w_lin64 = seg64(p["w_age"][0], p["w_sd"][0], 1.0)
    b_lin64 = seg64(p["b_age"][0], p["b_sd"][0], 0.0)
    m_age64 = seg64(jnp.ones((AGE_DIM,), f32), jnp.zeros((SIGNUP_DIM,), f32), 0.0)
    m_sd64 = seg64(jnp.zeros((AGE_DIM,), f32), jnp.ones((SIGNUP_DIM,), f32), 0.0)
    m_other64 = 1.0 - m_age64 - m_sd64
    g_seg64 = seg64(p["g_age"][0], p["g_sd"][0], 1.0)
    gn64 = g_seg64 * p["g_norm"][0]                   # g_seg * g_norm
    g01_64 = gn64 * p["g_norm1"][0]                   # g_seg * g_norm * g_norm1
    q1_64 = (g_seg64 * g_seg64) * (1.0 / D_MODEL)     # pre-scaled by 1/64
    q2_64 = (gn64 * gn64) * (1.0 / D_MODEL)

    rows = {
        ROW_W_LIN: both(w_lin64), ROW_B_LIN: both(b_lin64),
        ROW_MAGE_L: left(m_age64), ROW_MAGE_R: right(m_age64),
        ROW_MSD_L: left(m_sd64), ROW_MSD_R: right(m_sd64),
        ROW_MOTHER: both(m_other64),
        ROW_MLEFT: left(ones64), ROW_MRIGHT: right(ones64),
        ROW_Q1_L: left(q1_64), ROW_Q1_R: right(q1_64),
        ROW_Q2_L: left(q2_64), ROW_Q2_R: right(q2_64),
        ROW_GN: both(gn64), ROW_G01: both(g01_64),
        ROW_B2: both(p["b2"][0]),
    }
    slab = jnp.zeros((SLAB_ROWS, SLAB_W), f32)
    for r, v in rows.items():
        slab = slab.at[r, 0:LANES].set(v)
    slab = slab.at[ROW_B1, :].set(jnp.concatenate([p["b1"][0], p["b1"][0]]))

    # Block-diagonal weights: [x_left | x_right] @ diag(W, W).
    w1b = jnp.zeros((2 * D_MODEL, 2 * HIDDEN), f32)
    w1b = w1b.at[0:D_MODEL, 0:HIDDEN].set(p["w1"]).at[D_MODEL:, HIDDEN:].set(p["w1"])
    w2b = jnp.zeros((2 * HIDDEN, 2 * D_MODEL), f32)
    w2b = w2b.at[0:HIDDEN, 0:D_MODEL].set(p["w2"]).at[HIDDEN:, D_MODEL:].set(p["w2"])

    return {
        "gender_table": p["gender_table"],
        "pref_table": p["pref_table"],
        "slab": slab,
        "w1": w1b.astype(jnp.bfloat16),
        "w2": w2b.astype(jnp.bfloat16),
    }


# --------------------------------------------------------------------------
# Forward wrapper
# --------------------------------------------------------------------------
@partial(jax.jit, static_argnames=("tile",))
def user_tower_forward(age, gender, signup_date, preferences, kparams, *, tile=4096):
    B = age.shape[0]

    # Embedding gathers (tiny tables) + lane placement of all four feature
    # segments into one (B, 64) tensor — layout glue done once in XLA.
    gender_e = jnp.take(kparams["gender_table"], gender, axis=0)     # (B, 12)
    pref_e = jnp.take(kparams["pref_table"], preferences, axis=0)    # (B, 34)
    packed = jnp.concatenate(
        [jnp.broadcast_to(age, (B, AGE_DIM)),
         gender_e,
         jnp.broadcast_to(signup_date, (B, SIGNUP_DIM)),
         pref_e],
        axis=-1).astype(jnp.float32)                                 # (B, 64)

    # Lane-dense repack: two batch rows per 128-lane row.  Tile in row-pairs;
    # cap so the grid keeps >= 2 steps when possible (v7x has 2 TensorCores).
    B2 = (B + 1) // 2
    TB2 = min(_round_up(max(tile // 2, 8), 8), _round_up(B2, 8))
    half = _round_up((B2 + 1) // 2, 8)
    if 8 <= half < TB2:
        TB2 = half
    Bp2 = _round_up(B2, TB2)
    Bp = 2 * Bp2
    if Bp != B:
        packed = jnp.pad(packed, ((0, Bp - B), (0, 0)))
    packed2 = packed.reshape(Bp2, LANES)                             # free reshape

    out = pl.pallas_call(
        user_tower_kernel,
        out_shape=jax.ShapeDtypeStruct((Bp2, LANES), jnp.float32),
        grid=(Bp2 // TB2,),
        in_specs=[
            pl.BlockSpec((TB2, LANES), lambda i: (i, 0)),              # streamed activations
            pl.BlockSpec((SLAB_ROWS, SLAB_W), lambda i: (0, 0)),       # resident param slab
            pl.BlockSpec((2 * D_MODEL, 2 * HIDDEN), lambda i: (0, 0)),  # resident W1' (bf16)
            pl.BlockSpec((2 * HIDDEN, 2 * D_MODEL), lambda i: (0, 0)),  # resident W2' (bf16)
        ],
        out_specs=pl.BlockSpec((TB2, LANES), lambda i: (i, 0)),
        compiler_params=pltpu.CompilerParams(
            dimension_semantics=("parallel",),
            vmem_limit_bytes=48 * 1024 * 1024),
    )(packed2, kparams["slab"], kparams["w1"], kparams["w2"])

    return out.reshape(Bp, D_MODEL)[:B]


# --------------------------------------------------------------------------
# Pure-JAX reference (mirrors the PyTorch forward; bf16 at the MXU boundary
# to match the kernel's matmul numerics)
# --------------------------------------------------------------------------
def reference_forward(age, gender, signup_date, preferences, p):
    a = _rmsnorm(age @ p["w_age"] + p["b_age"], p["g_age"])
    s = _rmsnorm(signup_date @ p["w_sd"] + p["b_sd"], p["g_sd"])
    g = jnp.take(p["gender_table"], gender, axis=0)
    pr = jnp.take(p["pref_table"], preferences, axis=0)
    x = jnp.concatenate([a, g, s, pr], axis=-1)
    x = _rmsnorm(x, p["g_norm"])
    x1 = _rmsnorm(x, p["g_norm1"])
    y = jax.nn.relu(jnp.dot(x1.astype(jnp.bfloat16), p["w1"].astype(jnp.bfloat16),
                            preferred_element_type=jnp.float32) + p["b1"])
    z = jax.nn.relu(jnp.dot(y.astype(jnp.bfloat16), p["w2"].astype(jnp.bfloat16),
                            preferred_element_type=jnp.float32) + p["b2"])
    return z + x


if __name__ == "__main__":
    key = jax.random.PRNGKey(0)
    k_par, k_age, k_gen, k_sd, k_pref = jax.random.split(key, 5)

    B = 8
    raw_params = init_params(k_par)
    kparams = pack_params(raw_params)

    age = jax.random.uniform(k_age, (B, 1), jnp.float32, 18.0, 80.0)
    gender = jax.random.randint(k_gen, (B,), 0, 3, jnp.int32)
    signup_date = jax.random.uniform(k_sd, (B, 1), jnp.float32, 0.0, 1.0)
    preferences = jax.random.randint(k_pref, (B,), 0, 5, jnp.int32)

    out = user_tower_forward(age, gender, signup_date, preferences, kparams)
    out = jax.block_until_ready(out)

    ref = reference_forward(age, gender, signup_date, preferences, raw_params)
    assert out.shape == (B, D_MODEL)
    max_err = float(jnp.max(jnp.abs(out - ref)))
    assert jnp.allclose(out, ref, atol=2e-3, rtol=2e-3), \
        f"mismatch vs JAX reference (max abs err {max_err})"

    print("KERNEL_OK")
</pallas_src>

<mosaic_0001>
module attributes {stable_mosaic.version = 11 : i64} {
  func.func @user_tower_kernel(%arg0: i32, %arg1: memref<8x128xf32, #tpu.memory_space<vmem>>, %arg2: memref<24x256xf32, #tpu.memory_space<vmem>>, %arg3: memref<128x256xbf16, #tpu.memory_space<vmem>>, %arg4: memref<256x128xbf16, #tpu.memory_space<vmem>>, %arg5: memref<8x128xf32, #tpu.memory_space<vmem>>) attributes {dimension_semantics = [#tpu.dimension_semantics<parallel>], iteration_bounds = array<i64: 1>, scalar_prefetch = 0 : i64, scratch_operands = 0 : i64, tpu.core_type = #tpu.core_type<tc>, window_params = [{transform_indices = @transform_0, window_bounds = array<i64: 8, 128>}, {pipeline_mode = #tpu.pipeline_mode<synchronous>, transform_indices = @transform_1, window_bounds = array<i64: 24, 256>}, {pipeline_mode = #tpu.pipeline_mode<synchronous>, transform_indices = @transform_2, window_bounds = array<i64: 128, 256>}, {pipeline_mode = #tpu.pipeline_mode<synchronous>, transform_indices = @transform_3, window_bounds = array<i64: 256, 128>}, {transform_indices = @transform_4, window_bounds = array<i64: 8, 128>}]} {
    %c0 = arith.constant 0 : index
    %c0_0 = arith.constant 0 : index
    %0 = vector.load %arg1[%c0, %c0_0] : memref<8x128xf32, #tpu.memory_space<vmem>>, vector<8x128xf32>
    %c0_1 = arith.constant 0 : index
    %c0_2 = arith.constant 0 : index
    %1 = vector.load %arg2[%c0_1, %c0_2] : memref<24x256xf32, #tpu.memory_space<vmem>>, vector<1x128xf32>
    %2 = vector.broadcast %1 : vector<1x128xf32> to vector<8x128xf32>
    %3 = arith.mulf %0, %2 : vector<8x128xf32>
    %c1 = arith.constant 1 : index
    %c0_3 = arith.constant 0 : index
    %4 = vector.load %arg2[%c1, %c0_3] : memref<24x256xf32, #tpu.memory_space<vmem>>, vector<1x128xf32>
    %5 = vector.broadcast %4 : vector<1x128xf32> to vector<8x128xf32>
    %6 = arith.addf %3, %5 : vector<8x128xf32>
    %7 = arith.mulf %6, %6 : vector<8x128xf32>
    %c2 = arith.constant 2 : index
    %c0_4 = arith.constant 0 : index
    %8 = vector.load %arg2[%c2, %c0_4] : memref<24x256xf32, #tpu.memory_space<vmem>>, vector<1x128xf32>
    %9 = vector.broadcast %8 : vector<1x128xf32> to vector<8x128xf32>
    %10 = arith.mulf %7, %9 : vector<8x128xf32>
    %cst = arith.constant dense<0.000000e+00> : vector<8xf32>
    %11 = vector.multi_reduction <add>, %10, %cst [1] : vector<8x128xf32> to vector<8xf32>
    %12 = vector.shape_cast %11 : vector<8xf32> to vector<8x1xf32>
    %cst_5 = arith.constant 0.0833333358 : f32
    %13 = vector.broadcast %cst_5 : f32 to vector<8x1xf32>
    %14 = arith.mulf %12, %13 : vector<8x1xf32>
    %cst_6 = arith.constant 1.1920929E-7 : f32
    %15 = vector.broadcast %cst_6 : f32 to vector<8x1xf32>
    %16 = arith.addf %14, %15 : vector<8x1xf32>
    %17 = math.rsqrt %16 : vector<8x1xf32>
    %c3 = arith.constant 3 : index
    %c0_7 = arith.constant 0 : index
    %18 = vector.load %arg2[%c3, %c0_7] : memref<24x256xf32, #tpu.memory_space<vmem>>, vector<1x128xf32>
    %19 = vector.broadcast %18 : vector<1x128xf32> to vector<8x128xf32>
    %20 = arith.mulf %7, %19 : vector<8x128xf32>
    %cst_8 = arith.constant dense<0.000000e+00> : vector<8xf32>
    %21 = vector.multi_reduction <add>, %20, %cst_8 [1] : vector<8x128xf32> to vector<8xf32>
    %22 = vector.shape_cast %21 : vector<8xf32> to vector<8x1xf32>
    %cst_9 = arith.constant 0.0833333358 : f32
    %23 = vector.broadcast %cst_9 : f32 to vector<8x1xf32>
    %24 = arith.mulf %22, %23 : vector<8x1xf32>
    %cst_10 = arith.constant 1.1920929E-7 : f32
    %25 = vector.broadcast %cst_10 : f32 to vector<8x1xf32>
    %26 = arith.addf %24, %25 : vector<8x1xf32>
    %27 = math.rsqrt %26 : vector<8x1xf32>
    %c4 = arith.constant 4 : index
    %c0_11 = arith.constant 0 : index
    %28 = vector.load %arg2[%c4, %c0_11] : memref<24x256xf32, #tpu.memory_space<vmem>>, vector<1x128xf32>
    %29 = vector.broadcast %28 : vector<1x128xf32> to vector<8x128xf32>
    %30 = arith.mulf %7, %29 : vector<8x128xf32>
    %cst_12 = arith.constant dense<0.000000e+00> : vector<8xf32>
    %31 = vector.multi_reduction <add>, %30, %cst_12 [1] : vector<8x128xf32> to vector<8xf32>
    %32 = vector.shape_cast %31 : vector<8xf32> to vector<8x1xf32>
    %cst_13 = arith.constant 0.166666672 : f32
    %33 = vector.broadcast %cst_13 : f32 to vector<8x1xf32>
    %34 = arith.mulf %32, %33 : vector<8x1xf32>
    %cst_14 = arith.constant 1.1920929E-7 : f32
    %35 = vector.broadcast %cst_14 : f32 to vector<8x1xf32>
    %36 = arith.addf %34, %35 : vector<8x1xf32>
    %37 = math.rsqrt %36 : vector<8x1xf32>
    %c5 = arith.constant 5 : index
    %c0_15 = arith.constant 0 : index
    %38 = vector.load %arg2[%c5, %c0_15] : memref<24x256xf32, #tpu.memory_space<vmem>>, vector<1x128xf32>
    %39 = vector.broadcast %38 : vector<1x128xf32> to vector<8x128xf32>
    %40 = arith.mulf %7, %39 : vector<8x128xf32>
    %cst_16 = arith.constant dense<0.000000e+00> : vector<8xf32>
    %41 = vector.multi_reduction <add>, %40, %cst_16 [1] : vector<8x128xf32> to vector<8xf32>
    %42 = vector.shape_cast %41 : vector<8xf32> to vector<8x1xf32>
    %cst_17 = arith.constant 0.166666672 : f32
    %43 = vector.broadcast %cst_17 : f32 to vector<8x1xf32>
    %44 = arith.mulf %42, %43 : vector<8x1xf32>
    %cst_18 = arith.constant 1.1920929E-7 : f32
    %45 = vector.broadcast %cst_18 : f32 to vector<8x1xf32>
    %46 = arith.addf %44, %45 : vector<8x1xf32>
    %47 = math.rsqrt %46 : vector<8x1xf32>
    %c6 = arith.constant 6 : index
    %c0_19 = arith.constant 0 : index
    %48 = vector.load %arg2[%c6, %c0_19] : memref<24x256xf32, #tpu.memory_space<vmem>>, vector<1x128xf32>
    %c2_20 = arith.constant 2 : index
    %c0_21 = arith.constant 0 : index
    %49 = vector.load %arg2[%c2_20, %c0_21] : memref<24x256xf32, #tpu.memory_space<vmem>>, vector<1x128xf32>
    %50 = vector.broadcast %49 : vector<1x128xf32> to vector<8x128xf32>
    %51 = vector.broadcast %17 : vector<8x1xf32> to vector<8x128xf32>
    %52 = arith.mulf %50, %51 : vector<8x128xf32>
    %53 = vector.broadcast %48 : vector<1x128xf32> to vector<8x128xf32>
    %54 = arith.addf %53, %52 : vector<8x128xf32>
    %c3_22 = arith.constant 3 : index
    %c0_23 = arith.constant 0 : index
    %55 = vector.load %arg2[%c3_22, %c0_23] : memref<24x256xf32, #tpu.memory_space<vmem>>, vector<1x128xf32>
    %56 = vector.broadcast %55 : vector<1x128xf32> to vector<8x128xf32>
    %57 = vector.broadcast %27 : vector<8x1xf32> to vector<8x128xf32>
    %58 = arith.mulf %56, %57 : vector<8x128xf32>
    %59 = arith.addf %54, %58 : vector<8x128xf32>
    %c4_24 = arith.constant 4 : index
    %c0_25 = arith.constant 0 : index
    %60 = vector.load %arg2[%c4_24, %c0_25] : memref<24x256xf32, #tpu.memory_space<vmem>>, vector<1x128xf32>
    %61 = vector.broadcast %60 : vector<1x128xf32> to vector<8x128xf32>
    %62 = vector.broadcast %37 : vector<8x1xf32> to vector<8x128xf32>
    %63 = arith.mulf %61, %62 : vector<8x128xf32>
    %64 = arith.addf %59, %63 : vector<8x128xf32>
    %c5_26 = arith.constant 5 : index
    %c0_27 = arith.constant 0 : index
    %65 = vector.load %arg2[%c5_26, %c0_27] : memref<24x256xf32, #tpu.memory_space<vmem>>, vector<1x128xf32>
    %66 = vector.broadcast %65 : vector<1x128xf32> to vector<8x128xf32>
    %67 = vector.broadcast %47 : vector<8x1xf32> to vector<8x128xf32>
    %68 = arith.mulf %66, %67 : vector<8x128xf32>
    %69 = arith.addf %64, %68 : vector<8x128xf32>
    %70 = arith.mulf %6, %69 : vector<8x128xf32>
    %71 = arith.mulf %70, %70 : vector<8x128xf32>
    %c9 = arith.constant 9 : index
    %c0_28 = arith.constant 0 : index
    %72 = vector.load %arg2[%c9, %c0_28] : memref<24x256xf32, #tpu.memory_space<vmem>>, vector<1x128xf32>
    %73 = vector.broadcast %72 : vector<1x128xf32> to vector<8x128xf32>
    %74 = arith.mulf %71, %73 : vector<8x128xf32>
    %cst_29 = arith.constant dense<0.000000e+00> : vector<8xf32>
    %75 = vector.multi_reduction <add>, %74, %cst_29 [1] : vector<8x128xf32> to vector<8xf32>
    %76 = vector.shape_cast %75 : vector<8xf32> to vector<8x1xf32>
    %c10 = arith.constant 10 : index
    %c0_30 = arith.constant 0 : index
    %77 = vector.load %arg2[%c10, %c0_30] : memref<24x256xf32, #tpu.memory_space<vmem>>, vector<1x128xf32>
    %78 = vector.broadcast %77 : vector<1x128xf32> to vector<8x128xf32>
    %79 = arith.mulf %71, %78 : vector<8x128xf32>
    %cst_31 = arith.constant dense<0.000000e+00> : vector<8xf32>
    %80 = vector.multi_reduction <add>, %79, %cst_31 [1] : vector<8x128xf32> to vector<8xf32>
    %81 = vector.shape_cast %80 : vector<8xf32> to vector<8x1xf32>
    %c11 = arith.constant 11 : index
    %c0_32 = arith.constant 0 : index
    %82 = vector.load %arg2[%c11, %c0_32] : memref<24x256xf32, #tpu.memory_space<vmem>>, vector<1x128xf32>
    %83 = vector.broadcast %82 : vector<1x128xf32> to vector<8x128xf32>
    %84 = arith.mulf %71, %83 : vector<8x128xf32>
    %cst_33 = arith.constant dense<0.000000e+00> : vector<8xf32>
    %85 = vector.multi_reduction <add>, %84, %cst_33 [1] : vector<8x128xf32> to vector<8xf32>
    %86 = vector.shape_cast %85 : vector<8xf32> to vector<8x1xf32>
    %c12 = arith.constant 12 : index
    %c0_34 = arith.constant 0 : index
    %87 = vector.load %arg2[%c12, %c0_34] : memref<24x256xf32, #tpu.memory_space<vmem>>, vector<1x128xf32>
    %88 = vector.broadcast %87 : vector<1x128xf32> to vector<8x128xf32>
    %89 = arith.mulf %71, %88 : vector<8x128xf32>
    %cst_35 = arith.constant dense<0.000000e+00> : vector<8xf32>
    %90 = vector.multi_reduction <add>, %89, %cst_35 [1] : vector<8x128xf32> to vector<8xf32>
    %91 = vector.shape_cast %90 : vector<8xf32> to vector<8x1xf32>
    %cst_36 = arith.constant 1.1920929E-7 : f32
    %92 = vector.broadcast %cst_36 : f32 to vector<8x1xf32>
    %93 = arith.addf %76, %92 : vector<8x1xf32>
    %cst_37 = arith.constant 1.1920929E-7 : f32
    %94 = vector.broadcast %cst_37 : f32 to vector<8x1xf32>
    %95 = arith.addf %81, %94 : vector<8x1xf32>
    %96 = math.rsqrt %93 : vector<8x1xf32>
    %97 = math.rsqrt %95 : vector<8x1xf32>
    %98 = arith.divf %86, %93 : vector<8x1xf32>
    %cst_38 = arith.constant 1.1920929E-7 : f32
    %99 = vector.broadcast %cst_38 : f32 to vector<8x1xf32>
    %100 = arith.addf %98, %99 : vector<8x1xf32>
    %101 = math.rsqrt %100 : vector<8x1xf32>
    %102 = arith.divf %91, %95 : vector<8x1xf32>
    %cst_39 = arith.constant 1.1920929E-7 : f32
    %103 = vector.broadcast %cst_39 : f32 to vector<8x1xf32>
    %104 = arith.addf %102, %103 : vector<8x1xf32>
    %105 = math.rsqrt %104 : vector<8x1xf32>
    %c7 = arith.constant 7 : index
    %c0_40 = arith.constant 0 : index
    %106 = vector.load %arg2[%c7, %c0_40] : memref<24x256xf32, #tpu.memory_space<vmem>>, vector<1x128xf32>
    %107 = vector.broadcast %96 : vector<8x1xf32> to vector<8x128xf32>
    %108 = vector.broadcast %106 : vector<1x128xf32> to vector<8x128xf32>
    %109 = arith.mulf %107, %108 : vector<8x128xf32>
    %c8 = arith.constant 8 : index
    %c0_41 = arith.constant 0 : index
    %110 = vector.load %arg2[%c8, %c0_41] : memref<24x256xf32, #tpu.memory_space<vmem>>, vector<1x128xf32>
    %111 = vector.broadcast %97 : vector<8x1xf32> to vector<8x128xf32>
    %112 = vector.broadcast %110 : vector<1x128xf32> to vector<8x128xf32>
    %113 = arith.mulf %111, %112 : vector<8x128xf32>
    %114 = arith.addf %109, %113 : vector<8x128xf32>
    %115 = arith.mulf %96, %101 : vector<8x1xf32>
    %c7_42 = arith.constant 7 : index
    %c0_43 = arith.constant 0 : index
    %116 = vector.load %arg2[%c7_42, %c0_43] : memref<24x256xf32, #tpu.memory_space<vmem>>, vector<1x128xf32>
    %117 = vector.broadcast %115 : vector<8x1xf32> to vector<8x128xf32>
    %118 = vector.broadcast %116 : vector<1x128xf32> to vector<8x128xf32>
    %119 = arith.mulf %117, %118 : vector<8x128xf32>
    %120 = arith.mulf %97, %105 : vector<8x1xf32>
    %c8_44 = arith.constant 8 : index
    %c0_45 = arith.constant 0 : index
    %121 = vector.load %arg2[%c8_44, %c0_45] : memref<24x256xf32, #tpu.memory_space<vmem>>, vector<1x128xf32>
    %122 = vector.broadcast %120 : vector<8x1xf32> to vector<8x128xf32>
    %123 = vector.broadcast %121 : vector<1x128xf32> to vector<8x128xf32>
    %124 = arith.mulf %122, %123 : vector<8x128xf32>
    %125 = arith.addf %119, %124 : vector<8x128xf32>
    %c13 = arith.constant 13 : index
    %c0_46 = arith.constant 0 : index
    %126 = vector.load %arg2[%c13, %c0_46] : memref<24x256xf32, #tpu.memory_space<vmem>>, vector<1x128xf32>
    %127 = vector.broadcast %126 : vector<1x128xf32> to vector<8x128xf32>
    %128 = arith.mulf %70, %127 : vector<8x128xf32>
    %129 = arith.mulf %128, %114 : vector<8x128xf32>
    %c14 = arith.constant 14 : index
    %c0_47 = arith.constant 0 : index
    %130 = vector.load %arg2[%c14, %c0_47] : memref<24x256xf32, #tpu.memory_space<vmem>>, vector<1x128xf32>
    %131 = vector.broadcast %130 : vector<1x128xf32> to vector<8x128xf32>
    %132 = arith.mulf %70, %131 : vector<8x128xf32>
    %133 = arith.mulf %132, %125 : vector<8x128xf32>
    %c16 = arith.constant 16 : index
    %c0_48 = arith.constant 0 : index
    %134 = vector.load %arg2[%c16, %c0_48] : memref<24x256xf32, #tpu.memory_space<vmem>>, vector<1x256xf32>
    %135 = arith.truncf %133 : vector<8x128xf32> to vector<8x128xbf16>
    %c0_49 = arith.constant 0 : index
    %c0_50 = arith.constant 0 : index
    %136 = vector.load %arg3[%c0_49, %c0_50] : memref<128x256xbf16, #tpu.memory_space<vmem>>, vector<128x256xbf16>
    %cst_51 = arith.constant dense<0.000000e+00> : vector<8x256xf32>
    %137 = tpu.matmul %135, %136, %cst_51 {dimension_numbers = #tpu.dot_dimension_numbers<[1], [0], [0], [1], [0, 0, 1, 1], [], []>} : vector<8x128xbf16>, vector<128x256xbf16>, vector<8x256xf32> -> vector<8x256xf32>
    %138 = vector.broadcast %134 : vector<1x256xf32> to vector<8x256xf32>
    %139 = arith.addf %137, %138 : vector<8x256xf32>
    %cst_52 = arith.constant 0.000000e+00 : f32
    %140 = vector.broadcast %cst_52 : f32 to vector<8x256xf32>
    %141 = arith.maximumf %139, %140 : vector<8x256xf32>
    %142 = arith.truncf %141 : vector<8x256xf32> to vector<8x256xbf16>
    %c0_53 = arith.constant 0 : index
    %c0_54 = arith.constant 0 : index
    %143 = vector.load %arg4[%c0_53, %c0_54] : memref<256x128xbf16, #tpu.memory_space<vmem>>, vector<256x128xbf16>
    %cst_55 = arith.constant dense<0.000000e+00> : vector<8x128xf32>
    %144 = tpu.matmul %142, %143, %cst_55 {dimension_numbers = #tpu.dot_dimension_numbers<[1], [0], [0], [1], [0, 0, 1, 1], [], []>} : vector<8x256xbf16>, vector<256x128xbf16>, vector<8x128xf32> -> vector<8x128xf32>
    %c15 = arith.constant 15 : index
    %c0_56 = arith.constant 0 : index
    %145 = vector.load %arg2[%c15, %c0_56] : memref<24x256xf32, #tpu.memory_space<vmem>>, vector<1x128xf32>
    %146 = vector.broadcast %145 : vector<1x128xf32> to vector<8x128xf32>
    %147 = arith.addf %144, %146 : vector<8x128xf32>
    %cst_57 = arith.constant 0.000000e+00 : f32
    %148 = vector.broadcast %cst_57 : f32 to vector<8x128xf32>
    %149 = arith.maximumf %147, %148 : vector<8x128xf32>
    %150 = arith.addf %149, %129 : vector<8x128xf32>
    %c0_58 = arith.constant 0 : index
    %c0_59 = arith.constant 0 : index
    %151 = vector.load %arg5[%c0_58, %c0_59] : memref<8x128xf32, #tpu.memory_space<vmem>>, vector<8x128xf32>
    tpu.vector_store %arg5[%c0_58, %c0_59], %150 {strides = array<i32>} : memref<8x128xf32, #tpu.memory_space<vmem>>, vector<8x128xf32>,
    return
  }
  func.func @transform_0(%arg0: i32) -> (i32, i32) {
    %c0_i32 = arith.constant 0 : i32
    %c0_i32_0 = arith.constant 0 : i32
    return %arg0, %c0_i32 : i32, i32
  }
  func.func @transform_1(%arg0: i32) -> (i32, i32) {
    %c0_i32 = arith.constant 0 : i32
    %c0_i32_0 = arith.constant 0 : i32
    %c0_i32_1 = arith.constant 0 : i32
    return %c0_i32, %c0_i32_0 : i32, i32
  }
  func.func @transform_2(%arg0: i32) -> (i32, i32) {
    %c0_i32 = arith.constant 0 : i32
    %c0_i32_0 = arith.constant 0 : i32
    %c0_i32_1 = arith.constant 0 : i32
    return %c0_i32, %c0_i32_0 : i32, i32
  }
  func.func @transform_3(%arg0: i32) -> (i32, i32) {
    %c0_i32 = arith.constant 0 : i32
    %c0_i32_0 = arith.constant 0 : i32
    %c0_i32_1 = arith.constant 0 : i32
    return %c0_i32, %c0_i32_0 : i32, i32
  }
  func.func @transform_4(%arg0: i32) -> (i32, i32) {
    %c0_i32 = arith.constant 0 : i32
    %c0_i32_0 = arith.constant 0 : i32
    return %arg0, %c0_i32 : i32, i32
  }
}

</mosaic_0001>

<llo_original>
// kernel: user_tower_forward.1
$region0: #{user_tower_forward.1}
  #allocation0 [shape = 'u32[]', space=smem, size = 0x4, offset = 0x4, fixed_abs, tag = 'smem constant byte address 0x4 - core index']
  #allocation1 [shape = 'u32[144,128]{1,0:T(1,128)}', space=vmem, size = 0x12000, scoped, tag = 'internal scratch']
  %s0 = inlined_call_operand.vmem [shape: f32[8,128], index: 0, kind: input, shape index: {}]
  %s1 = inlined_call_operand.vmem [shape: f32[24,256], index: 1, kind: input, shape index: {}]
  %s2 = inlined_call_operand.vmem [shape: bf16[128,256], index: 2, kind: input, shape index: {}]
  %s3 = inlined_call_operand.vmem [shape: bf16[256,128], index: 3, kind: input, shape index: {}]
  %s4 = inlined_call_operand.vmem [shape: f32[8,128], index: 4, kind: output, shape index: {}]
  %s5 = sld [smem:[#allocation0]]
  $region26: #{user_tower_forward.1} parent=0
    _
  %s7 = ssub.s32 1, %s5
  %s8 = scalar_select 0, %s7, %s5
  // Predicated region
  $region2: #{user_tower_forward.1} parent=0 // pred_check
    _
  $region3: #{user_tower_forward.1} parent=0 // pred_check_branch
    %10 = sbr.rel (0) target = $region5
  $region4: #{user_tower_forward.1} parent=0 // pred_region
    _
  $region5: #{user_tower_forward.1} parent=0 // pred_fallthru
    _
  // Predicated region
  $region6: #{user_tower_forward.1} parent=0 // pred_check
    _
  $region7: #{user_tower_forward.1} parent=0 // pred_check_branch
    %12 = sbr.rel (0) target = $region9
  $region8: #{user_tower_forward.1} parent=0 // pred_region
    _
  $region9: #{user_tower_forward.1} parent=0 // pred_fallthru
    _
  // Predicated region
  $region10: #{user_tower_forward.1} parent=0 // pred_check
    _
  $region11: #{user_tower_forward.1} parent=0 // pred_check_branch
    %14 = sbr.rel (0) target = $region13
  $region12: #{user_tower_forward.1} parent=0 // pred_region
    _
  $region13: #{user_tower_forward.1} parent=0 // pred_fallthru
    _
  // Predicated region
  $region14: #{user_tower_forward.1} parent=0 // pred_check
    _
  $region15: #{user_tower_forward.1} parent=0 // pred_check_branch
    %16 = sbr.rel (0) target = $region17
  $region16: #{user_tower_forward.1} parent=0 // pred_region
    _
  $region17: #{user_tower_forward.1} parent=0 // pred_fallthru
    _
  %v18 = vld [vmem:[%s0] sm:$0xff]
  %v19 = vld [vmem:[%s1] ss:$0 sm:$0xff]
  %v20 = vmul.f32 %v18, %v19
  %v21 = vld [vmem:[%s1 + $0x1] ss:$0 sm:$0xff]
  %v22 = vadd.f32 %v20, %v21
  %v23 = vmul.f32 %v22, %v22
  %v24 = vld [vmem:[%s1 + $0x2] ss:$0 sm:$0xff]
  %v25 = vmul.f32 %v23, %v24
  %26 = vadd.xlane.f32.xlu0 %v25
  %v27 = vpop.xlane.xlu0 %26
  %v28 = vmul.f32 %v27, 0.083333336
  %v29 = vadd.f32 %v28, 1.1920929e-07
  %v30 = vrsqrt.pop %v29
  %v31 = vld [vmem:[%s1 + $0x3] ss:$0 sm:$0xff]
  %v32 = vmul.f32 %v23, %v31
  %33 = vadd.xlane.f32.xlu0 %v32
  %v34 = vpop.xlane.xlu0 %33
  %v35 = vmul.f32 %v34, 0.083333336
  %v36 = vadd.f32 %v35, 1.1920929e-07
  %v37 = vrsqrt.pop %v36
  %v38 = vld [vmem:[%s1 + $0x4] ss:$0 sm:$0xff]
  %v39 = vmul.f32 %v23, %v38
  %40 = vadd.xlane.f32.xlu0 %v39
  %v41 = vpop.xlane.xlu0 %40
  %v42 = vmul.f32 %v41, 0.16666667
  %v43 = vadd.f32 %v42, 1.1920929e-07
  %v44 = vrsqrt.pop %v43
  %v45 = vld [vmem:[%s1 + $0x5] ss:$0 sm:$0xff]
  %v46 = vmul.f32 %v23, %v45
  %47 = vadd.xlane.f32.xlu0 %v46
  %v48 = vpop.xlane.xlu0 %47
  %v49 = vmul.f32 %v48, 0.16666667
  %v50 = vadd.f32 %v49, 1.1920929e-07
  %v51 = vrsqrt.pop %v50
  %v52 = vld [vmem:[%s1 + $0x6] ss:$0 sm:$0xff]
  %v53 = vmul.f32 %v24, %v30
  %v54 = vadd.f32 %v52, %v53
  %v55 = vmul.f32 %v31, %v37
  %v56 = vadd.f32 %v54, %v55
  %v57 = vmul.f32 %v38, %v44
  %v58 = vadd.f32 %v56, %v57
  %v59 = vmul.f32 %v45, %v51
  %v60 = vadd.f32 %v58, %v59
  %v61 = vmul.f32 %v22, %v60
  %v62 = vmul.f32 %v61, %v61
  %v63 = vld [vmem:[%s1 + $0x11] ss:$0 sm:$0xff]
  %v64 = vmul.f32 %v62, %v63
  %65 = vadd.xlane.f32.xlu0 %v64
  %v66 = vpop.xlane.xlu0 %65
  %v67 = vld [vmem:[%s1 + $0x12] ss:$0 sm:$0xff]
  %v68 = vmul.f32 %v62, %v67
  %69 = vadd.xlane.f32.xlu0 %v68
  %v70 = vpop.xlane.xlu0 %69
  %v71 = vld [vmem:[%s1 + $0x13] ss:$0 sm:$0xff]
  %v72 = vmul.f32 %v62, %v71
  %73 = vadd.xlane.f32.xlu0 %v72
  %v74 = vpop.xlane.xlu0 %73
  %v75 = vld [vmem:[%s1 + $0x14] ss:$0 sm:$0xff]
  %v76 = vmul.f32 %v62, %v75
  %77 = vadd.xlane.f32.xlu0 %v76
  %v78 = vpop.xlane.xlu0 %77
  %v79 = vadd.f32 %v66, 1.1920929e-07
  %v80 = vadd.f32 %v70, 1.1920929e-07
  %v81 = vrsqrt.pop %v79
  %v82 = vrsqrt.pop %v80
  %v83 = vrcp.pop %v79
  %v84 = vmul.f32 %v74, %v83
  %v85 = vadd.f32 %v84, 1.1920929e-07
  %v86 = vrsqrt.pop %v85
  %v87 = vrcp.pop %v80
  %v88 = vmul.f32 %v78, %v87
  %v89 = vadd.f32 %v88, 1.1920929e-07
  %v90 = vrsqrt.pop %v89
  %v91 = vld [vmem:[%s1 + $0x7] ss:$0 sm:$0xff]
  %v92 = vmul.f32 %v81, %v91
  %v93 = vld [vmem:[%s1 + $0x10] ss:$0 sm:$0xff]
  %v94 = vmul.f32 %v82, %v93
  %v95 = vadd.f32 %v92, %v94
  %v96 = vmul.f32 %v81, %v86
  %v97 = vmul.f32 %v96, %v91
  %v98 = vmul.f32 %v82, %v90
  %v99 = vmul.f32 %v98, %v93
  %v100 = vadd.f32 %v97, %v99
  %v101 = vld [vmem:[%s1 + $0x15] ss:$0 sm:$0xff]
  %v102 = vmul.f32 %v61, %v101
  %v103 = vmul.f32 %v102, %v95
  %v104 = vld [vmem:[%s1 + $0x16] ss:$0 sm:$0xff]
  %v105 = vmul.f32 %v61, %v104
  %v106 = vmul.f32 %v105, %v100
  %s107 = scalar_lea.vmem %s1, 32
  %v108 = vld [vmem:[%s107] ss:$8 sm:$0x3]
  %v109 = vpack.c.bf16 %v106, %v106
  %v110 = vld [vmem:[%s2] sm:$0xff]
  %v111 = vld [vmem:[%s2 + $0x8] sm:$0xff]
  %v112 = vld [vmem:[%s2 + $0x10] sm:$0xff]
  %v113 = vld [vmem:[%s2 + $0x18] sm:$0xff]
  %v114 = vld [vmem:[%s2 + $0x20] sm:$0xff]
  %v115 = vld [vmem:[%s2 + $0x28] sm:$0xff]
  %v116 = vld [vmem:[%s2 + $0x30] sm:$0xff]
  %v117 = vld [vmem:[%s2 + $0x38] sm:$0xff]
  %v118 = vld [vmem:[%s2 + $0x40] sm:$0xff]
  %v119 = vld [vmem:[%s2 + $0x48] sm:$0xff]
  %v120 = vld [vmem:[%s2 + $0x50] sm:$0xff]
  %v121 = vld [vmem:[%s2 + $0x58] sm:$0xff]
  %v122 = vld [vmem:[%s2 + $0x60] sm:$0xff]
  %v123 = vld [vmem:[%s2 + $0x68] sm:$0xff]
  %v124 = vld [vmem:[%s2 + $0x70] sm:$0xff]
  %v125 = vld [vmem:[%s2 + $0x78] sm:$0xff]
  %v127 = vlaneseq
  %v128 = vshrl.u32 %v127, 7
  %v129 = vsub.s32 0, %v128
  %v130 = vrot.slane %v108, %v129
  %v131 = vlaneseq
  %v132 = vshrl.u32 %v131, 7
  %v133 = vsub.s32 1, %v132
  %v134 = vrot.slane %v108, %v133
  %v153 = vunpack.c.l.b16 %v110
  %v154 = vunpack.c.h.b16 %v110
  %v155 = vunpack.c.l.b16 %v111
  %v156 = vunpack.c.h.b16 %v111
  %v157 = vunpack.c.l.b16 %v112
  %v158 = vunpack.c.h.b16 %v112
  %v159 = vunpack.c.l.b16 %v113
  %v160 = vunpack.c.h.b16 %v113
  %v161 = vunpack.c.l.b16 %v114
  %v162 = vunpack.c.h.b16 %v114
  %v163 = vunpack.c.l.b16 %v115
  %v164 = vunpack.c.h.b16 %v115
  %v165 = vunpack.c.l.b16 %v116
  %v166 = vunpack.c.h.b16 %v116
  %v167 = vunpack.c.l.b16 %v117
  %v168 = vunpack.c.h.b16 %v117
  %v169 = vunpack.c.l.b16 %v118
  %v170 = vunpack.c.h.b16 %v118
  %v171 = vunpack.c.l.b16 %v119
  %v172 = vunpack.c.h.b16 %v119
  %v173 = vunpack.c.l.b16 %v120
  %v174 = vunpack.c.h.b16 %v120
  %v175 = vunpack.c.l.b16 %v121
  %v176 = vunpack.c.h.b16 %v121
  %v177 = vunpack.c.l.b16 %v122
  %v178 = vunpack.c.h.b16 %v122
  %v179 = vunpack.c.l.b16 %v123
  %v180 = vunpack.c.h.b16 %v123
  %v181 = vunpack.c.l.b16 %v124
  %v182 = vunpack.c.h.b16 %v124
  %v183 = vunpack.c.l.b16 %v125
  %v184 = vunpack.c.h.b16 %v125
  %v185 = vpack.c.b16 %v155, %v153
  %v186 = vpack.c.b16 %v156, %v154
  %v187 = vpack.c.b16 %v159, %v157
  %v188 = vpack.c.b16 %v160, %v158
  %v189 = vpack.c.b16 %v163, %v161
  %v190 = vpack.c.b16 %v164, %v162
  %v191 = vpack.c.b16 %v167, %v165
  %v192 = vpack.c.b16 %v168, %v166
  %v193 = vpack.c.b16 %v171, %v169
  %v194 = vpack.c.b16 %v172, %v170
  %v195 = vpack.c.b16 %v175, %v173
  %v196 = vpack.c.b16 %v176, %v174
  %v197 = vpack.c.b16 %v179, %v177
  %v198 = vpack.c.b16 %v180, %v178
  %v199 = vpack.c.b16 %v183, %v181
  %v200 = vpack.c.b16 %v184, %v182
  %217 = vmatprep.subr.bf16.mxu0 %v186
  %218 = vmatpush1.bf16.msra.mxu0 %v185
  %219 = vmatprep.subr.bf16.mxu0 %v188
  %220 = vmatpush1.bf16.msra.mxu0 %v187
  %221 = vmatprep.subr.bf16.mxu0 %v190
  %222 = vmatpush1.bf16.msra.mxu0 %v189
  %223 = vmatprep.subr.bf16.mxu0 %v192
  %224 = vmatpush1.bf16.msra.mxu0 %v191
  %225 = vmatprep.subr.bf16.mxu0 %v194
  %226 = vmatpush1.bf16.msra.mxu0 %v193
  %227 = vmatprep.subr.bf16.mxu0 %v196
  %228 = vmatpush1.bf16.msra.mxu0 %v195
  %229 = vmatprep.subr.bf16.mxu0 %v198
  %230 = vmatpush1.bf16.msra.mxu0 %v197
  %231 = vmatprep.subr.bf16.mxu0 %v200
  %232 = vmatpush1.bf16.msra.mxu0 %v199
  %233 = vmatprep.subr.bf16.mxu0 0
  %234 = vmatpush1.bf16.msra.mxu0 0
  %235 = vmatprep.subr.bf16.mxu0 0
  %236 = vmatpush1.bf16.msra.mxu0 0
  %237 = vmatprep.subr.bf16.mxu0 0
  %238 = vmatpush1.bf16.msra.mxu0 0
  %239 = vmatprep.subr.bf16.mxu0 0
  %240 = vmatpush1.bf16.msra.mxu0 0
  %241 = vmatprep.subr.bf16.mxu0 0
  %242 = vmatpush1.bf16.msra.mxu0 0
  %243 = vmatprep.subr.bf16.mxu0 0
  %244 = vmatpush1.bf16.msra.mxu0 0
  %245 = vmatprep.subr.bf16.mxu0 0
  %246 = vmatpush1.bf16.msra.mxu0 0
  %247 = vmatprep.subr.bf16.mxu0 0
  %248 = vmatpush1.bf16.msra.mxu0 0
  %249 = vmatprep.mubr.bf16.mxu0 0
  %250 = vmatmul.mubr.bf16.gmra.mrb[0].mxu0 %v109
  %v251 = vpop.f32.mrb[0].mxu0
  %v252 = vadd.f32 %v130, %v251
  %v253 = vpop.f32.mrb[0].mxu0
  %v254 = vadd.f32 %v134, %v253
  %v255 = vpop.f32.mrb[0].mxu0
  %v256 = vpop.f32.mrb[0].mxu0
  %257 = vdwg.mxu0
  %v258 = vmax.f32 %v252, 0.0
  %v259 = vmax.f32 %v254, 0.0
  %v260 = vpack.c.bf16 %v258, %v258
  %v261 = vpack.c.bf16 %v259, %v259
  %v262 = vld [vmem:[%s3] sm:$0xf]
  %v263 = vld [vmem:[%s3 + $0x4] sm:$0xf]
  %v264 = vld [vmem:[%s3 + $0x8] sm:$0xf]
  %v265 = vld [vmem:[%s3 + $0xc] sm:$0xf]
  %v266 = vld [vmem:[%s3 + $0x10] sm:$0xf]
  %v267 = vld [vmem:[%s3 + $0x14] sm:$0xf]
  %v268 = vld [vmem:[%s3 + $0x18] sm:$0xf]
  %v269 = vld [vmem:[%s3 + $0x1c] sm:$0xf]
  %v270 = vld [vmem:[%s3 + $0x20] sm:$0xf]
  %v271 = vld [vmem:[%s3 + $0x24] sm:$0xf]
  %v272 = vld [vmem:[%s3 + $0x28] sm:$0xf]
  %v273 = vld [vmem:[%s3 + $0x2c] sm:$0xf]
  %v274 = vld [vmem:[%s3 + $0x30] sm:$0xf]
  %v275 = vld [vmem:[%s3 + $0x34] sm:$0xf]
  %v276 = vld [vmem:[%s3 + $0x38] sm:$0xf]
  %v277 = vld [vmem:[%s3 + $0x3c] sm:$0xf]
  %v278 = vld [vmem:[%s3 + $0x40] sm:$0xf]
  %v279 = vld [vmem:[%s3 + $0x44] sm:$0xf]
  %v280 = vld [vmem:[%s3 + $0x48] sm:$0xf]
  %v281 = vld [vmem:[%s3 + $0x4c] sm:$0xf]
  %v282 = vld [vmem:[%s3 + $0x50] sm:$0xf]
  %v283 = vld [vmem:[%s3 + $0x54] sm:$0xf]
  %v284 = vld [vmem:[%s3 + $0x58] sm:$0xf]
  %v285 = vld [vmem:[%s3 + $0x5c] sm:$0xf]
  %v286 = vld [vmem:[%s3 + $0x60] sm:$0xf]
  %v287 = vld [vmem:[%s3 + $0x64] sm:$0xf]
  %v288 = vld [vmem:[%s3 + $0x68] sm:$0xf]
  %v289 = vld [vmem:[%s3 + $0x6c] sm:$0xf]
  %v290 = vld [vmem:[%s3 + $0x70] sm:$0xf]
  %v291 = vld [vmem:[%s3 + $0x74] sm:$0xf]
  %v292 = vld [vmem:[%s3 + $0x78] sm:$0xf]
  %v293 = vld [vmem:[%s3 + $0x7c] sm:$0xf]
  %v294 = vld [vmem:[%s1 + $0x17] ss:$0 sm:$0xff]
  %v327 = vunpack.c.l.b16 %v262
  %v328 = vunpack.c.l.b16 %v263
  %v329 = vunpack.c.l.b16 %v264
  %v330 = vunpack.c.l.b16 %v265
  %v331 = vunpack.c.l.b16 %v266
  %v332 = vunpack.c.l.b16 %v267
  %v333 = vunpack.c.l.b16 %v268
  %v334 = vunpack.c.l.b16 %v269
  %v335 = vunpack.c.l.b16 %v270
  %v336 = vunpack.c.l.b16 %v271
  %v337 = vunpack.c.l.b16 %v272
  %v338 = vunpack.c.l.b16 %v273
  %v339 = vunpack.c.l.b16 %v274
  %v340 = vunpack.c.l.b16 %v275
  %v341 = vunpack.c.l.b16 %v276
  %v342 = vunpack.c.l.b16 %v277
  %v343 = vunpack.c.l.b16 %v278
  %v344 = vunpack.c.l.b16 %v279
  %v345 = vunpack.c.l.b16 %v280
  %v346 = vunpack.c.l.b16 %v281
  %v347 = vunpack.c.l.b16 %v282
  %v348 = vunpack.c.l.b16 %v283
  %v349 = vunpack.c.l.b16 %v284
  %v350 = vunpack.c.l.b16 %v285
  %v351 = vunpack.c.l.b16 %v286
  %v352 = vunpack.c.l.b16 %v287
  %v353 = vunpack.c.l.b16 %v288
  %v354 = vunpack.c.l.b16 %v289
  %v355 = vunpack.c.l.b16 %v290
  %v356 = vunpack.c.l.b16 %v291
  %v357 = vunpack.c.l.b16 %v292
  %v358 = vunpack.c.l.b16 %v293
  %v359 = vpack.c.b16 %v328, %v327
  %v360 = vpack.c.b16 %v330, %v329
  %v361 = vpack.c.b16 %v332, %v331
  %v362 = vpack.c.b16 %v334, %v333
  %v363 = vpack.c.b16 %v336, %v335
  %v364 = vpack.c.b16 %v338, %v337
  %v365 = vpack.c.b16 %v340, %v339
  %v366 = vpack.c.b16 %v342, %v341
  %v367 = vpack.c.b16 %v344, %v343
  %v368 = vpack.c.b16 %v346, %v345
  %v369 = vpack.c.b16 %v348, %v347
  %v370 = vpack.c.b16 %v350, %v349
  %v371 = vpack.c.b16 %v352, %v351
  %v372 = vpack.c.b16 %v354, %v353
  %v373 = vpack.c.b16 %v356, %v355
  %v374 = vpack.c.b16 %v358, %v357
  %391 = vmatprep.subr.bf16.mxu0 0
  %392 = vmatpush1.bf16.msra.mxu0 %v359
  %393 = vmatprep.subr.bf16.mxu0 0
  %394 = vmatpush1.bf16.msra.mxu0 %v360
  %395 = vmatprep.subr.bf16.mxu0 0
  %396 = vmatpush1.bf16.msra.mxu0 %v361
  %397 = vmatprep.subr.bf16.mxu0 0
  %398 = vmatpush1.bf16.msra.mxu0 %v362
  %399 = vmatprep.subr.bf16.mxu0 0
  %400 = vmatpush1.bf16.msra.mxu0 %v363
  %401 = vmatprep.subr.bf16.mxu0 0
  %402 = vmatpush1.bf16.msra.mxu0 %v364
  %403 = vmatprep.subr.bf16.mxu0 0
  %404 = vmatpush1.bf16.msra.mxu0 %v365
  %405 = vmatprep.subr.bf16.mxu0 0
  %406 = vmatpush1.bf16.msra.mxu0 %v366
  %407 = vmatprep.subr.bf16.mxu0 0
  %408 = vmatpush1.bf16.msra.mxu0 %v367
  %409 = vmatprep.subr.bf16.mxu0 0
  %410 = vmatpush1.bf16.msra.mxu0 %v368
  %411 = vmatprep.subr.bf16.mxu0 0
  %412 = vmatpush1.bf16.msra.mxu0 %v369
  %413 = vmatprep.subr.bf16.mxu0 0
  %414 = vmatpush1.bf16.msra.mxu0 %v370
  %415 = vmatprep.subr.bf16.mxu0 0
  %416 = vmatpush1.bf16.msra.mxu0 %v371
  %417 = vmatprep.subr.bf16.mxu0 0
  %418 = vmatpush1.bf16.msra.mxu0 %v372
  %419 = vmatprep.subr.bf16.mxu0 0
  %420 = vmatpush1.bf16.msra.mxu0 %v373
  %421 = vmatprep.subr.bf16.mxu0 0
  %422 = vmatpush1.bf16.msra.mxu0 %v374
  %423 = vmatprep.mubr.bf16.mxu0 %v261
  %424 = vmatmul.mubr.bf16.gmra.mrb[0].mxu0 %v260
  %v425 = vpop.f32.mrb[0].mxu0
  %v426 = vadd.f32 %v294, %v425
  %v427 = vpop.f32.mrb[0].mxu0
  %v428 = vpop.f32.mrb[0].mxu0
  %v429 = vpop.f32.mrb[0].mxu0
  %430 = vdwg.mxu0
  %v431 = vmax.f32 %v426, 0.0
  %v432 = vadd.f32 %v431, %v103
  %433 = vst [vmem:[%s4] sm:$0xff] %v432
  // Predicated region
  $region18: #{user_tower_forward.1} parent=0 // pred_check
    _
  $region19: #{user_tower_forward.1} parent=0 // pred_check_branch
    %435 = sbr.rel (0) target = $region21
  $region20: #{user_tower_forward.1} parent=0 // pred_region
    _
  $region21: #{user_tower_forward.1} parent=0 // pred_fallthru
    _
  // Predicated region
  $region22: #{user_tower_forward.1} parent=0 // pred_check
    _
  $region23: #{user_tower_forward.1} parent=0 // pred_check_branch
    %437 = sbr.rel (0) target = $region25
  $region24: #{user_tower_forward.1} parent=0 // pred_region
    _
  $region25: #{user_tower_forward.1} parent=0 // pred_fallthru
    _

</llo_original>
